<compile_context>
chip_gen: v5e
topology: v5e:2x2
jax: 0.10.0
libtpu: 0.0.40
codegen_flags: <defaults>
</compile_context>

<pallas_src>
import functools

import jax
import jax.numpy as jnp
from jax.experimental import pallas as pl
from jax.experimental.pallas import tpu as pltpu

IN_FEATURES = 26
OUT_FEATURES = 4
GROUP = 128 // OUT_FEATURES          # 32 batch rows packed per 128-lane output row
K_G = GROUP * IN_FEATURES            # 832  grouped contraction dim
N_G = GROUP * OUT_FEATURES           # 128  grouped (lane-dense) output dim


def linear_kernel(xg_ref, w_hi_ref, w_lo_ref, b_ref, og_ref):
    # xg_ref: (gb, 832) f32 | w_hi/w_lo: (832, 128) bf16 | b_ref: (1, 128) f32
    # og_ref: (gb, 128) f32
    x = xg_ref[...]
    x_hi = x.astype(jnp.bfloat16)
    x_lo = (x - x_hi.astype(jnp.float32)).astype(jnp.bfloat16)
    w_hi = w_hi_ref[...]
    w_lo = w_lo_ref[...]
    # Manual 3-pass "HIGH" precision: hi*hi + lo*hi + hi*lo, f32 accumulation.
    acc = jnp.dot(x_hi, w_hi, preferred_element_type=jnp.float32)
    acc = acc + jnp.dot(x_lo, w_hi, preferred_element_type=jnp.float32)
    acc = acc + jnp.dot(x_hi, w_lo, preferred_element_type=jnp.float32)
    og_ref[...] = (acc + b_ref[...]).astype(og_ref.dtype)


def pack_params(w_t, b):
    """Expand (26, 4) weight / (4,) bias into grouped lane-dense bf16 hi/lo form.

    w_big[26*g + k, 4*g + j] = w_t[k, j]   (block diagonal, 32 blocks)
    b_big[0, 4*g + j]        = b[j]
    """
    w_big = jnp.kron(jnp.eye(GROUP, dtype=w_t.dtype), w_t)            # (832, 128) f32
    w_hi = w_big.astype(jnp.bfloat16)
    w_lo = (w_big - w_hi.astype(jnp.float32)).astype(jnp.bfloat16)
    b_big = jnp.tile(b.reshape(1, OUT_FEATURES), (1, GROUP))          # (1, 128) f32
    return w_hi, w_lo, b_big


def _choose_gb(g_rows, rows_per_block):
    """Pick the grouped-row tile size (sublane dim of the x / out blocks)."""
    gb_cap = max(8, min(rows_per_block // GROUP, 2048))   # 2048 -> ~17 MiB VMEM total
    gb_cap = (gb_cap // 8) * 8
    if g_rows <= gb_cap:
        if g_rows < 16:
            return g_rows                      # single full-extent block (always legal)
        # Split into >=2 blocks so both v7x TensorCores get work.
        half = ((g_rows + 1) // 2 + 7) // 8 * 8
        return min(half, gb_cap)
    return gb_cap


@functools.partial(jax.jit, static_argnames=("rows_per_block",))
def linear_forward(x, w_t, b, w_hi_big, w_lo_big, b_big, *, rows_per_block=32768):
    """x: (B, 26) f32 -> (B, 4) f32, equivalent to nn.Linear(26, 4)."""
    B = x.shape[0]
    main = (B // GROUP) * GROUP                # largest multiple-of-32 prefix
    outs = []

    if main > 0:
        g_rows = main // GROUP
        x_g = x[:main].reshape(g_rows, K_G)    # free row-major regroup (B,26)->(B/32,832)

        gb = _choose_gb(g_rows, rows_per_block)
        grid = (pl.cdiv(g_rows, gb),)

        # VMEM budget: double-buffered x/out tiles + resident bf16 weights (+ slack).
        in_tile = gb * K_G * 4
        out_tile = gb * N_G * 4
        w_bytes = 2 * K_G * N_G * 2
        need = 2 * (in_tile + out_tile) + 2 * w_bytes + (1 << 20)
        vmem_limit = int(min(max(need + (8 << 20), 32 << 20), 48 << 20))

        cost = pl.CostEstimate(
            flops=3 * 2 * g_rows * K_G * N_G,          # 3 bf16 MXU passes
            transcendentals=0,
            bytes_accessed=g_rows * (K_G + N_G) * 4 + 2 * w_bytes + N_G * 4,
        )

        out_g = pl.pallas_call(
            linear_kernel,
            out_shape=jax.ShapeDtypeStruct((g_rows, N_G), jnp.float32),
            grid_spec=pltpu.PrefetchScalarGridSpec(
                num_scalar_prefetch=0,
                grid=grid,
                in_specs=[
                    pl.BlockSpec((gb, K_G), lambda i: (i, 0)),    # streamed batch tiles
                    pl.BlockSpec((K_G, N_G), lambda i: (0, 0)),   # weight hi (resident)
                    pl.BlockSpec((K_G, N_G), lambda i: (0, 0)),   # weight lo (resident)
                    pl.BlockSpec((1, N_G), lambda i: (0, 0)),     # bias (resident)
                ],
                out_specs=pl.BlockSpec((gb, N_G), lambda i: (i, 0)),
            ),
            compiler_params=pltpu.CompilerParams(
                dimension_semantics=("parallel",),
                vmem_limit_bytes=vmem_limit,
            ),
            cost_estimate=cost,
        )(x_g, w_hi_big, w_lo_big, b_big)

        outs.append(out_g.reshape(main, OUT_FEATURES))

    if main < B:
        # <=31-row tail: tiny plain dot instead of padding/copying the whole input.
        tail = x[main:]
        outs.append(
            jnp.dot(tail, w_t, precision=jax.lax.Precision.HIGHEST) + b
        )

    return outs[0] if len(outs) == 1 else jnp.concatenate(outs, axis=0)


def init_params(key):
    """Deterministic init mimicking nn.Linear default (uniform(-1/sqrt(fan_in), ...))."""
    k_w, k_b = jax.random.split(key)
    bound = 1.0 / jnp.sqrt(jnp.float32(IN_FEATURES))
    # PyTorch stores weight as (out, in); keep the transposed (in, out) copy for x @ W^T.
    w = jax.random.uniform(k_w, (OUT_FEATURES, IN_FEATURES), jnp.float32, -bound, bound)
    b = jax.random.uniform(k_b, (OUT_FEATURES,), jnp.float32, -bound, bound)
    return w.T, b


if __name__ == "__main__":
    key = jax.random.PRNGKey(0)
    k_params, k_x1, k_x2, k_x3 = jax.random.split(key, 4)

    w_t, b = init_params(k_params)
    w_hi_big, w_lo_big, b_big = pack_params(w_t, b)

    # batch=64: exact multiple of the 32-row pack (kernel only)
    # batch=74: ragged (kernel prefix + 10-row tail)
    # batch=1280: multi-block grid (exercises >=2 parallel blocks)
    for batch, kx in ((64, k_x1), (74, k_x2), (1280, k_x3)):
        x = jax.random.normal(kx, (batch, IN_FEATURES), jnp.float32)
        out = linear_forward(x, w_t, b, w_hi_big, w_lo_big, b_big)
        jax.block_until_ready(out)

        ref = jnp.dot(x, w_t, precision=jax.lax.Precision.HIGHEST) + b
        assert out.shape == (batch, OUT_FEATURES)
        err = float(jnp.max(jnp.abs(out - ref)))
        assert err < 1e-4, ("max abs err", err)

    print("KERNEL_OK")
</pallas_src>

<mosaic_0001>
module attributes {stable_mosaic.version = 11 : i64} {
  func.func @linear_kernel(%arg0: i32, %arg1: memref<2x832xf32, #tpu.memory_space<vmem>>, %arg2: memref<832x128xbf16, #tpu.memory_space<vmem>>, %arg3: memref<832x128xbf16, #tpu.memory_space<vmem>>, %arg4: memref<1x128xf32, #tpu.memory_space<vmem>>, %arg5: memref<2x128xf32, #tpu.memory_space<vmem>>) attributes {dimension_semantics = [#tpu.dimension_semantics<parallel>], iteration_bounds = array<i64: 1>, scalar_prefetch = 0 : i64, scratch_operands = 0 : i64, tpu.core_type = #tpu.core_type<tc>, window_params = [{transform_indices = @transform_0, window_bounds = array<i64: 2, 832>}, {pipeline_mode = #tpu.pipeline_mode<synchronous>, transform_indices = @transform_1, window_bounds = array<i64: 832, 128>}, {pipeline_mode = #tpu.pipeline_mode<synchronous>, transform_indices = @transform_2, window_bounds = array<i64: 832, 128>}, {pipeline_mode = #tpu.pipeline_mode<synchronous>, transform_indices = @transform_3, window_bounds = array<i64: 1, 128>}, {transform_indices = @transform_4, window_bounds = array<i64: 2, 128>}]} {
    %c0 = arith.constant 0 : index
    %c0_0 = arith.constant 0 : index
    %0 = vector.load %arg1[%c0, %c0_0] : memref<2x832xf32, #tpu.memory_space<vmem>>, vector<2x832xf32>
    %1 = arith.truncf %0 : vector<2x832xf32> to vector<2x832xbf16>
    %2 = arith.extf %1 : vector<2x832xbf16> to vector<2x832xf32>
    %3 = arith.subf %0, %2 : vector<2x832xf32>
    %4 = arith.truncf %3 : vector<2x832xf32> to vector<2x832xbf16>
    %c0_1 = arith.constant 0 : index
    %c0_2 = arith.constant 0 : index
    %5 = vector.load %arg2[%c0_1, %c0_2] : memref<832x128xbf16, #tpu.memory_space<vmem>>, vector<832x128xbf16>
    %c0_3 = arith.constant 0 : index
    %c0_4 = arith.constant 0 : index
    %6 = vector.load %arg3[%c0_3, %c0_4] : memref<832x128xbf16, #tpu.memory_space<vmem>>, vector<832x128xbf16>
    %cst = arith.constant dense<0.000000e+00> : vector<2x128xf32>
    %7 = tpu.matmul %1, %5, %cst {dimension_numbers = #tpu.dot_dimension_numbers<[1], [0], [0], [1], [0, 0, 1, 1], [], []>} : vector<2x832xbf16>, vector<832x128xbf16>, vector<2x128xf32> -> vector<2x128xf32>
    %cst_5 = arith.constant dense<0.000000e+00> : vector<2x128xf32>
    %8 = tpu.matmul %4, %5, %cst_5 {dimension_numbers = #tpu.dot_dimension_numbers<[1], [0], [0], [1], [0, 0, 1, 1], [], []>} : vector<2x832xbf16>, vector<832x128xbf16>, vector<2x128xf32> -> vector<2x128xf32>
    %9 = arith.addf %7, %8 : vector<2x128xf32>
    %cst_6 = arith.constant dense<0.000000e+00> : vector<2x128xf32>
    %10 = tpu.matmul %1, %6, %cst_6 {dimension_numbers = #tpu.dot_dimension_numbers<[1], [0], [0], [1], [0, 0, 1, 1], [], []>} : vector<2x832xbf16>, vector<832x128xbf16>, vector<2x128xf32> -> vector<2x128xf32>
    %11 = arith.addf %9, %10 : vector<2x128xf32>
    %c0_7 = arith.constant 0 : index
    %c0_8 = arith.constant 0 : index
    %12 = vector.load %arg4[%c0_7, %c0_8] : memref<1x128xf32, #tpu.memory_space<vmem>>, vector<1x128xf32>
    %13 = vector.broadcast %12 : vector<1x128xf32> to vector<2x128xf32>
    %14 = arith.addf %11, %13 : vector<2x128xf32>
    %c0_9 = arith.constant 0 : index
    %c0_10 = arith.constant 0 : index
    %15 = vector.load %arg5[%c0_9, %c0_10] : memref<2x128xf32, #tpu.memory_space<vmem>>, vector<2x128xf32>
    tpu.vector_store %arg5[%c0_9, %c0_10], %14 {strides = array<i32>} : memref<2x128xf32, #tpu.memory_space<vmem>>, vector<2x128xf32>,
    return
  }
  func.func @transform_0(%arg0: i32) -> (i32, i32) {
    %c0_i32 = arith.constant 0 : i32
    %c0_i32_0 = arith.constant 0 : i32
    return %arg0, %c0_i32 : i32, i32
  }
  func.func @transform_1(%arg0: i32) -> (i32, i32) {
    %c0_i32 = arith.constant 0 : i32
    %c0_i32_0 = arith.constant 0 : i32
    %c0_i32_1 = arith.constant 0 : i32
    return %c0_i32, %c0_i32_0 : i32, i32
  }
  func.func @transform_2(%arg0: i32) -> (i32, i32) {
    %c0_i32 = arith.constant 0 : i32
    %c0_i32_0 = arith.constant 0 : i32
    %c0_i32_1 = arith.constant 0 : i32
    return %c0_i32, %c0_i32_0 : i32, i32
  }
  func.func @transform_3(%arg0: i32) -> (i32, i32) {
    %c0_i32 = arith.constant 0 : i32
    %c0_i32_0 = arith.constant 0 : i32
    %c0_i32_1 = arith.constant 0 : i32
    return %c0_i32, %c0_i32_0 : i32, i32
  }
  func.func @transform_4(%arg0: i32) -> (i32, i32) {
    %c0_i32 = arith.constant 0 : i32
    %c0_i32_0 = arith.constant 0 : i32
    return %arg0, %c0_i32 : i32, i32
  }
}

</mosaic_0001>

<llo_original>
// kernel: linear_forward.1
$region0: #{linear_forward.1}
  #allocation0 [shape = 'u32[]', space=smem, size = 0x4, offset = 0x4, fixed_abs, tag = 'smem constant byte address 0x4 - core index']
  #allocation1 [shape = 'u32[72,128]{1,0:T(1,128)}', space=vmem, size = 0x9000, scoped, tag = 'internal scratch']
  %s0 = inlined_call_operand.vmem [shape: f32[2,832], index: 0, kind: input, shape index: {}]
  %s1 = inlined_call_operand.hbm [shape: bf16[832,128], index: 1, kind: input, shape index: {}]
  %s2 = inlined_call_operand.hbm [shape: bf16[832,128], index: 2, kind: input, shape index: {}]
  %s3 = inlined_call_operand.vmem [shape: f32[1,128], index: 3, kind: input, shape index: {}]
  %s4 = inlined_call_operand.vmem [shape: f32[2,128], index: 4, kind: output, shape index: {}]
  %s5 = sld [smem:[#allocation0]]
  $region34: #{linear_forward.1} parent=0
    _
  %s7 = ssub.s32 1, %s5
  %s8 = scalar_select 0, %s7, %s5
  $region1: #{linear_forward.1} parent=0
    #allocation2 [shape = 'u8[212992]{0}', space=vmem, size = 0x34000, scoped, tag = 'input window, operand 1, single buffered']
    #allocation3 [shape = 's32[1]{0}', space=sflag, size = 0x4, scoped, tag = 'scoped memory for linear_forward.1']
    #allocation4 [shape = 'u8[212992]{0}', space=vmem, size = 0x34000, scoped, tag = 'input window, operand 2, single buffered']
    #allocation5 [shape = 's32[1]{0}', space=sflag, size = 0x4, scoped, tag = 'scoped memory for linear_forward.1']
    %9 = vsyncpa [#allocation3], 0
    %10 = vsyncpa [#allocation5], 0
    // Predicated region
    $region2: #{linear_forward.1} parent=1 // pred_check
      _
    $region3: #{linear_forward.1} parent=1 // pred_check_branch
      %12 = sbr.rel (0) target = $region5
    $region4: #{linear_forward.1} parent=1 // pred_region
      _
    $region5: #{linear_forward.1} parent=1 // pred_fallthru
      _
    // Predicated region
    $region6: #{linear_forward.1} parent=1 // pred_check
      _
    $region7: #{linear_forward.1} parent=1 // pred_check_branch
      %14 = sbr.rel (0) target = $region9
    $region8: #{linear_forward.1} parent=1 // pred_region
      %16 = vsyncadd [#allocation3], 0
      %s17 = sshll.u32 %s1, 4
      %s18 = int_to_ptr.hbm [resolvable:$true] %s17
      %s19 = sshll.u32 [#allocation2], 4
      %s20 = int_to_ptr.vmem [resolvable:$true] %s19
      %25 = dma.hbm_to_vmem [thread:$0]  %s18, 6656, %s20, [#allocation3], 64, 64, 4
    $region9: #{linear_forward.1} parent=1 // pred_fallthru
      _
    // Predicated region
    $region10: #{linear_forward.1} parent=1 // pred_check
      _
    $region11: #{linear_forward.1} parent=1 // pred_check_branch
      %27 = sbr.rel (0) target = $region13
    $region12: #{linear_forward.1} parent=1 // pred_region
      %29 = vsyncadd [#allocation5], 0
      %s30 = sshll.u32 %s2, 4
      %s31 = int_to_ptr.hbm [resolvable:$true] %s30
      %s32 = sshll.u32 [#allocation4], 4
      %s33 = int_to_ptr.vmem [resolvable:$true] %s32
      %38 = dma.hbm_to_vmem [thread:$0]  %s31, 6656, %s33, [#allocation5], 64, 64, 4
    $region13: #{linear_forward.1} parent=1 // pred_fallthru
      _
    // Predicated region
    $region14: #{linear_forward.1} parent=1 // pred_check
      _
    $region15: #{linear_forward.1} parent=1 // pred_check_branch
      %40 = sbr.rel (0) target = $region17
    $region16: #{linear_forward.1} parent=1 // pred_region
      _
    $region17: #{linear_forward.1} parent=1 // pred_fallthru
      _
    // Predicated region
    $region18: #{linear_forward.1} parent=1 // pred_check
      _
    $region19: #{linear_forward.1} parent=1 // pred_check_branch
      %42 = sbr.rel (0) target = $region21
    $region20: #{linear_forward.1} parent=1 // pred_region
      %44 = dma.done [#allocation3], 6656
    $region21: #{linear_forward.1} parent=1 // pred_fallthru
      _
    // Predicated region
    $region22: #{linear_forward.1} parent=1 // pred_check
      _
    $region23: #{linear_forward.1} parent=1 // pred_check_branch
      %46 = sbr.rel (0) target = $region25
    $region24: #{linear_forward.1} parent=1 // pred_region
      %48 = dma.done [#allocation5], 6656
    $region25: #{linear_forward.1} parent=1 // pred_fallthru
      _
    %v50 = vld [vmem:[%s0] sm:$0xff]
    %v51 = vld [vmem:[%s0 + $0x8] sm:$0x3f]
    %54 = vst [vmem:[#allocation1] ss:$4 sm:$0xff] %v50
    %s55 = scalar_lea.vmem [#allocation1], 32
    %56 = vst [vmem:[%s55] ss:$4 sm:$0xff] %v51
    %v57 = vld.sshfl [vmem:[#allocation1] sm:$0xff pattern:$0x73625140]
    %v58 = vld.sshfl [vmem:[#allocation1 + $0x8] sm:$0xff pattern:$0x73625140]
    %v59 = vld.sshfl [vmem:[#allocation1 + $0x10] sm:$0xff pattern:$0x73625140]
    %v60 = vld.sshfl [vmem:[#allocation1 + $0x18] sm:$0xff pattern:$0x73625140]
    %v61 = vld.sshfl [vmem:[#allocation1 + $0x20] sm:$0xff pattern:$0x73625140]
    %v62 = vld.sshfl [vmem:[#allocation1 + $0x28] sm:$0xff pattern:$0x73625140]
    %v63 = vld.sshfl [vmem:[#allocation1 + $0x30] sm:$0xff pattern:$0x73625140]
    %v71 = vpack.c.bf16 %v58, %v57
    %v72 = vpack.c.bf16 %v60, %v59
    %v73 = vpack.c.bf16 %v62, %v61
    %v74 = vpack.c.bf16 %v63, %v63
    %v75 = vunpack.c.l.bf16 %v71
    %v76 = vunpack.c.h.bf16 %v71
    %v77 = vunpack.c.l.bf16 %v72
    %v78 = vunpack.c.h.bf16 %v72
    %v79 = vunpack.c.l.bf16 %v73
    %v80 = vunpack.c.h.bf16 %v73
    %v81 = vunpack.c.l.bf16 %v74
    %v89 = vrot.slane %v76, 6
    %v90 = vrot.slane %v77, 4
    %v91 = vrot.slane %v78, 2
    %v92 = vrot.slane %v80, 6
    %v93 = vrot.slane %v81, 4
    %vm94 = vcmask 1041408
    %v95 = vsel %vm94, %v75, %v89
    %vm96 = vcmask 1045508
    %v97 = vsel %vm96, %v90, %v91
    %vm98 = vcmask 1043456
    %v99 = vsel %vm98, %v95, %v97
    %v100 = vsel %vm94, %v79, %v92
    %v101 = vsel %vm98, %v100, %v93
    %v104 = vsub.f32 %v50, %v99
    %v105 = vsub.f32 %v51, %v101
    %108 = vst [vmem:[#allocation1] ss:$4 sm:$0xff] %v104
    %s109 = scalar_lea.vmem [#allocation1], 32
    %110 = vst [vmem:[%s109] ss:$4 sm:$0xff] %v105
    %v111 = vld.sshfl [vmem:[#allocation1] sm:$0xff pattern:$0x73625140]
    %v112 = vld.sshfl [vmem:[#allocation1 + $0x8] sm:$0xff pattern:$0x73625140]
    %v113 = vld.sshfl [vmem:[#allocation1 + $0x10] sm:$0xff pattern:$0x73625140]
    %v114 = vld.sshfl [vmem:[#allocation1 + $0x18] sm:$0xff pattern:$0x73625140]
    %v115 = vld.sshfl [vmem:[#allocation1 + $0x20] sm:$0xff pattern:$0x73625140]
    %v116 = vld.sshfl [vmem:[#allocation1 + $0x28] sm:$0xff pattern:$0x73625140]
    %v117 = vld.sshfl [vmem:[#allocation1 + $0x30] sm:$0xff pattern:$0x73625140]
    %v125 = vpack.c.bf16 %v111, %v111
    %v126 = vpack.c.bf16 %v112, %v112
    %v127 = vpack.c.bf16 %v113, %v113
    %v128 = vpack.c.bf16 %v114, %v114
    %v129 = vpack.c.bf16 %v115, %v115
    %v130 = vpack.c.bf16 %v116, %v116
    %v131 = vpack.c.bf16 %v117, %v117
    %v132 = vld [vmem:[#allocation2] sm:$0xf]
    %v133 = vld [vmem:[#allocation2 + $0x4] sm:$0xf]
    %v134 = vld [vmem:[#allocation2 + $0x8] sm:$0xf]
    %v135 = vld [vmem:[#allocation2 + $0xc] sm:$0xf]
    %v136 = vld [vmem:[#allocation2 + $0x10] sm:$0xf]
    %v137 = vld [vmem:[#allocation2 + $0x14] sm:$0xf]
    %v138 = vld [vmem:[#allocation2 + $0x18] sm:$0xf]
    %v139 = vld [vmem:[#allocation2 + $0x1c] sm:$0xf]
    %v140 = vld [vmem:[#allocation2 + $0x20] sm:$0xf]
    %v141 = vld [vmem:[#allocation2 + $0x24] sm:$0xf]
    %v142 = vld [vmem:[#allocation2 + $0x28] sm:$0xf]
    %v143 = vld [vmem:[#allocation2 + $0x2c] sm:$0xf]
    %v144 = vld [vmem:[#allocation2 + $0x30] sm:$0xf]
    %v145 = vld [vmem:[#allocation2 + $0x34] sm:$0xf]
    %v146 = vld [vmem:[#allocation2 + $0x38] sm:$0xf]
    %v147 = vld [vmem:[#allocation2 + $0x3c] sm:$0xf]
    %v148 = vld [vmem:[#allocation2 + $0x40] sm:$0xf]
    %v149 = vld [vmem:[#allocation2 + $0x44] sm:$0xf]
    %v150 = vld [vmem:[#allocation2 + $0x48] sm:$0xf]
    %v151 = vld [vmem:[#allocation2 + $0x4c] sm:$0xf]
    %v152 = vld [vmem:[#allocation2 + $0x50] sm:$0xf]
    %v153 = vld [vmem:[#allocation2 + $0x54] sm:$0xf]
    %v154 = vld [vmem:[#allocation2 + $0x58] sm:$0xf]
    %v155 = vld [vmem:[#allocation2 + $0x5c] sm:$0xf]
    %v156 = vld [vmem:[#allocation2 + $0x60] sm:$0xf]
    %v157 = vld [vmem:[#allocation2 + $0x64] sm:$0xf]
    %v158 = vld [vmem:[#allocation2 + $0x68] sm:$0xf]
    %v159 = vld [vmem:[#allocation2 + $0x6c] sm:$0xf]
    %v160 = vld [vmem:[#allocation2 + $0x70] sm:$0xf]
    %v161 = vld [vmem:[#allocation2 + $0x74] sm:$0xf]
    %v162 = vld [vmem:[#allocation2 + $0x78] sm:$0xf]
    %v163 = vld [vmem:[#allocation2 + $0x7c] sm:$0xf]
    %v164 = vld [vmem:[#allocation2 + $0x80] sm:$0xf]
    %v165 = vld [vmem:[#allocation2 + $0x84] sm:$0xf]
    %v166 = vld [vmem:[#allocation2 + $0x88] sm:$0xf]
    %v167 = vld [vmem:[#allocation2 + $0x8c] sm:$0xf]
    %v168 = vld [vmem:[#allocation2 + $0x90] sm:$0xf]
    %v169 = vld [vmem:[#allocation2 + $0x94] sm:$0xf]
    %v170 = vld [vmem:[#allocation2 + $0x98] sm:$0xf]
    %v171 = vld [vmem:[#allocation2 + $0x9c] sm:$0xf]
    %v172 = vld [vmem:[#allocation2 + $0xa0] sm:$0xf]
    %v173 = vld [vmem:[#allocation2 + $0xa4] sm:$0xf]
    %v174 = vld [vmem:[#allocation2 + $0xa8] sm:$0xf]
    %v175 = vld [vmem:[#allocation2 + $0xac] sm:$0xf]
    %v176 = vld [vmem:[#allocation2 + $0xb0] sm:$0xf]
    %v177 = vld [vmem:[#allocation2 + $0xb4] sm:$0xf]
    %v178 = vld [vmem:[#allocation2 + $0xb8] sm:$0xf]
    %v179 = vld [vmem:[#allocation2 + $0xbc] sm:$0xf]
    %v180 = vld [vmem:[#allocation2 + $0xc0] sm:$0xf]
    %v181 = vld [vmem:[#allocation2 + $0xc4] sm:$0xf]
    %v182 = vld [vmem:[#allocation2 + $0xc8] sm:$0xf]
    %v183 = vld [vmem:[#allocation2 + $0xcc] sm:$0xf]
    %v184 = vld [vmem:[#allocation2 + $0xd0] sm:$0xf]
    %v185 = vld [vmem:[#allocation2 + $0xd4] sm:$0xf]
    %v186 = vld [vmem:[#allocation2 + $0xd8] sm:$0xf]
    %v187 = vld [vmem:[#allocation2 + $0xdc] sm:$0xf]
    %v188 = vld [vmem:[#allocation2 + $0xe0] sm:$0xf]
    %v189 = vld [vmem:[#allocation2 + $0xe4] sm:$0xf]
    %v190 = vld [vmem:[#allocation2 + $0xe8] sm:$0xf]
    %v191 = vld [vmem:[#allocation2 + $0xec] sm:$0xf]
    %v192 = vld [vmem:[#allocation2 + $0xf0] sm:$0xf]
    %v193 = vld [vmem:[#allocation2 + $0xf4] sm:$0xf]
    %v194 = vld [vmem:[#allocation2 + $0xf8] sm:$0xf]
    %v195 = vld [vmem:[#allocation2 + $0xfc] sm:$0xf]
    %v196 = vld [vmem:[#allocation2 + $0x100] sm:$0xf]
    %v197 = vld [vmem:[#allocation2 + $0x104] sm:$0xf]
    %v198 = vld [vmem:[#allocation2 + $0x108] sm:$0xf]
    %v199 = vld [vmem:[#allocation2 + $0x10c] sm:$0xf]
    %v200 = vld [vmem:[#allocation2 + $0x110] sm:$0xf]
    %v201 = vld [vmem:[#allocation2 + $0x114] sm:$0xf]
    %v202 = vld [vmem:[#allocation2 + $0x118] sm:$0xf]
    %v203 = vld [vmem:[#allocation2 + $0x11c] sm:$0xf]
    %v204 = vld [vmem:[#allocation2 + $0x120] sm:$0xf]
    %v205 = vld [vmem:[#allocation2 + $0x124] sm:$0xf]
    %v206 = vld [vmem:[#allocation2 + $0x128] sm:$0xf]
    %v207 = vld [vmem:[#allocation2 + $0x12c] sm:$0xf]
    %v208 = vld [vmem:[#allocation2 + $0x130] sm:$0xf]
    %v209 = vld [vmem:[#allocation2 + $0x134] sm:$0xf]
    %v210 = vld [vmem:[#allocation2 + $0x138] sm:$0xf]
    %v211 = vld [vmem:[#allocation2 + $0x13c] sm:$0xf]
    %v212 = vld [vmem:[#allocation2 + $0x140] sm:$0xf]
    %v213 = vld [vmem:[#allocation2 + $0x144] sm:$0xf]
    %v214 = vld [vmem:[#allocation2 + $0x148] sm:$0xf]
    %v215 = vld [vmem:[#allocation2 + $0x14c] sm:$0xf]
    %v216 = vld [vmem:[#allocation2 + $0x150] sm:$0xf]
    %v217 = vld [vmem:[#allocation2 + $0x154] sm:$0xf]
    %v218 = vld [vmem:[#allocation2 + $0x158] sm:$0xf]
    %v219 = vld [vmem:[#allocation2 + $0x15c] sm:$0xf]
    %v220 = vld [vmem:[#allocation2 + $0x160] sm:$0xf]
    %v221 = vld [vmem:[#allocation2 + $0x164] sm:$0xf]
    %v222 = vld [vmem:[#allocation2 + $0x168] sm:$0xf]
    %v223 = vld [vmem:[#allocation2 + $0x16c] sm:$0xf]
    %v224 = vld [vmem:[#allocation2 + $0x170] sm:$0xf]
    %v225 = vld [vmem:[#allocation2 + $0x174] sm:$0xf]
    %v226 = vld [vmem:[#allocation2 + $0x178] sm:$0xf]
    %v227 = vld [vmem:[#allocation2 + $0x17c] sm:$0xf]
    %v228 = vld [vmem:[#allocation2 + $0x180] sm:$0xf]
    %v229 = vld [vmem:[#allocation2 + $0x184] sm:$0xf]
    %v230 = vld [vmem:[#allocation2 + $0x188] sm:$0xf]
    %v231 = vld [vmem:[#allocation2 + $0x18c] sm:$0xf]
    %v232 = vld [vmem:[#allocation2 + $0x190] sm:$0xf]
    %v233 = vld [vmem:[#allocation2 + $0x194] sm:$0xf]
    %v234 = vld [vmem:[#allocation2 + $0x198] sm:$0xf]
    %v235 = vld [vmem:[#allocation2 + $0x19c] sm:$0xf]
    %v236 = vld [vmem:[#allocation4] sm:$0xf]
    %v237 = vld [vmem:[#allocation4 + $0x4] sm:$0xf]
    %v238 = vld [vmem:[#allocation4 + $0x8] sm:$0xf]
    %v239 = vld [vmem:[#allocation4 + $0xc] sm:$0xf]
    %v240 = vld [vmem:[#allocation4 + $0x10] sm:$0xf]
    %v241 = vld [vmem:[#allocation4 + $0x14] sm:$0xf]
    %v242 = vld [vmem:[#allocation4 + $0x18] sm:$0xf]
    %v243 = vld [vmem:[#allocation4 + $0x1c] sm:$0xf]
    %v244 = vld [vmem:[#allocation4 + $0x20] sm:$0xf]
    %v245 = vld [vmem:[#allocation4 + $0x24] sm:$0xf]
    %v246 = vld [vmem:[#allocation4 + $0x28] sm:$0xf]
    %v247 = vld [vmem:[#allocation4 + $0x2c] sm:$0xf]
    %v248 = vld [vmem:[#allocation4 + $0x30] sm:$0xf]
    %v249 = vld [vmem:[#allocation4 + $0x34] sm:$0xf]
    %v250 = vld [vmem:[#allocation4 + $0x38] sm:$0xf]
    %v251 = vld [vmem:[#allocation4 + $0x3c] sm:$0xf]
    %v252 = vld [vmem:[#allocation4 + $0x40] sm:$0xf]
    %v253 = vld [vmem:[#allocation4 + $0x44] sm:$0xf]
    %v254 = vld [vmem:[#allocation4 + $0x48] sm:$0xf]
    %v255 = vld [vmem:[#allocation4 + $0x4c] sm:$0xf]
    %v256 = vld [vmem:[#allocation4 + $0x50] sm:$0xf]
    %v257 = vld [vmem:[#allocation4 + $0x54] sm:$0xf]
    %v258 = vld [vmem:[#allocation4 + $0x58] sm:$0xf]
    %v259 = vld [vmem:[#allocation4 + $0x5c] sm:$0xf]
    %v260 = vld [vmem:[#allocation4 + $0x60] sm:$0xf]
    %v261 = vld [vmem:[#allocation4 + $0x64] sm:$0xf]
    %v262 = vld [vmem:[#allocation4 + $0x68] sm:$0xf]
    %v263 = vld [vmem:[#allocation4 + $0x6c] sm:$0xf]
    %v264 = vld [vmem:[#allocation4 + $0x70] sm:$0xf]
    %v265 = vld [vmem:[#allocation4 + $0x74] sm:$0xf]
    %v266 = vld [vmem:[#allocation4 + $0x78] sm:$0xf]
    %v267 = vld [vmem:[#allocation4 + $0x7c] sm:$0xf]
    %v268 = vld [vmem:[#allocation4 + $0x80] sm:$0xf]
    %v269 = vld [vmem:[#allocation4 + $0x84] sm:$0xf]
    %v270 = vld [vmem:[#allocation4 + $0x88] sm:$0xf]
    %v271 = vld [vmem:[#allocation4 + $0x8c] sm:$0xf]
    %v272 = vld [vmem:[#allocation4 + $0x90] sm:$0xf]
    %v273 = vld [vmem:[#allocation4 + $0x94] sm:$0xf]
    %v274 = vld [vmem:[#allocation4 + $0x98] sm:$0xf]
    %v275 = vld [vmem:[#allocation4 + $0x9c] sm:$0xf]
    %v276 = vld [vmem:[#allocation4 + $0xa0] sm:$0xf]
    %v277 = vld [vmem:[#allocation4 + $0xa4] sm:$0xf]
    %v278 = vld [vmem:[#allocation4 + $0xa8] sm:$0xf]
    %v279 = vld [vmem:[#allocation4 + $0xac] sm:$0xf]
    %v280 = vld [vmem:[#allocation4 + $0xb0] sm:$0xf]
    %v281 = vld [vmem:[#allocation4 + $0xb4] sm:$0xf]
    %v282 = vld [vmem:[#allocation4 + $0xb8] sm:$0xf]
    %v283 = vld [vmem:[#allocation4 + $0xbc] sm:$0xf]
    %v284 = vld [vmem:[#allocation4 + $0xc0] sm:$0xf]
    %v285 = vld [vmem:[#allocation4 + $0xc4] sm:$0xf]
    %v286 = vld [vmem:[#allocation4 + $0xc8] sm:$0xf]
    %v287 = vld [vmem:[#allocation4 + $0xcc] sm:$0xf]
    %v288 = vld [vmem:[#allocation4 + $0xd0] sm:$0xf]
    %v289 = vld [vmem:[#allocation4 + $0xd4] sm:$0xf]
    %v290 = vld [vmem:[#allocation4 + $0xd8] sm:$0xf]
    %v291 = vld [vmem:[#allocation4 + $0xdc] sm:$0xf]
    %v292 = vld [vmem:[#allocation4 + $0xe0] sm:$0xf]
    %v293 = vld [vmem:[#allocation4 + $0xe4] sm:$0xf]
    %v294 = vld [vmem:[#allocation4 + $0xe8] sm:$0xf]
    %v295 = vld [vmem:[#allocation4 + $0xec] sm:$0xf]
    %v296 = vld [vmem:[#allocation4 + $0xf0] sm:$0xf]
    %v297 = vld [vmem:[#allocation4 + $0xf4] sm:$0xf]
    %v298 = vld [vmem:[#allocation4 + $0xf8] sm:$0xf]
    %v299 = vld [vmem:[#allocation4 + $0xfc] sm:$0xf]
    %v300 = vld [vmem:[#allocation4 + $0x100] sm:$0xf]
    %v301 = vld [vmem:[#allocation4 + $0x104] sm:$0xf]
    %v302 = vld [vmem:[#allocation4 + $0x108] sm:$0xf]
    %v303 = vld [vmem:[#allocation4 + $0x10c] sm:$0xf]
    %v304 = vld [vmem:[#allocation4 + $0x110] sm:$0xf]
    %v305 = vld [vmem:[#allocation4 + $0x114] sm:$0xf]
    %v306 = vld [vmem:[#allocation4 + $0x118] sm:$0xf]
    %v307 = vld [vmem:[#allocation4 + $0x11c] sm:$0xf]
    %v308 = vld [vmem:[#allocation4 + $0x120] sm:$0xf]
    %v309 = vld [vmem:[#allocation4 + $0x124] sm:$0xf]
    %v310 = vld [vmem:[#allocation4 + $0x128] sm:$0xf]
    %v311 = vld [vmem:[#allocation4 + $0x12c] sm:$0xf]
    %v312 = vld [vmem:[#allocation4 + $0x130] sm:$0xf]
    %v313 = vld [vmem:[#allocation4 + $0x134] sm:$0xf]
    %v314 = vld [vmem:[#allocation4 + $0x138] sm:$0xf]
    %v315 = vld [vmem:[#allocation4 + $0x13c] sm:$0xf]
    %v316 = vld [vmem:[#allocation4 + $0x140] sm:$0xf]
    %v317 = vld [vmem:[#allocation4 + $0x144] sm:$0xf]
    %v318 = vld [vmem:[#allocation4 + $0x148] sm:$0xf]
    %v319 = vld [vmem:[#allocation4 + $0x14c] sm:$0xf]
    %v320 = vld [vmem:[#allocation4 + $0x150] sm:$0xf]
    %v321 = vld [vmem:[#allocation4 + $0x154] sm:$0xf]
    %v322 = vld [vmem:[#allocation4 + $0x158] sm:$0xf]
    %v323 = vld [vmem:[#allocation4 + $0x15c] sm:$0xf]
    %v324 = vld [vmem:[#allocation4 + $0x160] sm:$0xf]
    %v325 = vld [vmem:[#allocation4 + $0x164] sm:$0xf]
    %v326 = vld [vmem:[#allocation4 + $0x168] sm:$0xf]
    %v327 = vld [vmem:[#allocation4 + $0x16c] sm:$0xf]
    %v328 = vld [vmem:[#allocation4 + $0x170] sm:$0xf]
    %v329 = vld [vmem:[#allocation4 + $0x174] sm:$0xf]
    %v330 = vld [vmem:[#allocation4 + $0x178] sm:$0xf]
    %v331 = vld [vmem:[#allocation4 + $0x17c] sm:$0xf]
    %v332 = vld [vmem:[#allocation4 + $0x180] sm:$0xf]
    %v333 = vld [vmem:[#allocation4 + $0x184] sm:$0xf]
    %v334 = vld [vmem:[#allocation4 + $0x188] sm:$0xf]
    %v335 = vld [vmem:[#allocation4 + $0x18c] sm:$0xf]
    %v336 = vld [vmem:[#allocation4 + $0x190] sm:$0xf]
    %v337 = vld [vmem:[#allocation4 + $0x194] sm:$0xf]
    %v338 = vld [vmem:[#allocation4 + $0x198] sm:$0xf]
    %v339 = vld [vmem:[#allocation4 + $0x19c] sm:$0xf]
    %v444 = vunpack.c.l.b16 %v132
    %v445 = vunpack.c.l.b16 %v133
    %v446 = vunpack.c.l.b16 %v134
    %v447 = vunpack.c.l.b16 %v135
    %v448 = vunpack.c.l.b16 %v136
    %v449 = vunpack.c.l.b16 %v137
    %v450 = vunpack.c.l.b16 %v138
    %v451 = vunpack.c.l.b16 %v139
    %v452 = vunpack.c.l.b16 %v140
    %v453 = vunpack.c.l.b16 %v141
    %v454 = vunpack.c.l.b16 %v142
    %v455 = vunpack.c.l.b16 %v143
    %v456 = vunpack.c.l.b16 %v144
    %v457 = vunpack.c.l.b16 %v145
    %v458 = vunpack.c.l.b16 %v146
    %v459 = vunpack.c.l.b16 %v147
    %v460 = vunpack.c.l.b16 %v148
    %v461 = vunpack.c.l.b16 %v149
    %v462 = vunpack.c.l.b16 %v150
    %v463 = vunpack.c.l.b16 %v151
    %v464 = vunpack.c.l.b16 %v152
    %v465 = vunpack.c.l.b16 %v153
    %v466 = vunpack.c.l.b16 %v154
    %v467 = vunpack.c.l.b16 %v155
    %v468 = vunpack.c.l.b16 %v156
    %v469 = vunpack.c.l.b16 %v157
    %v470 = vunpack.c.l.b16 %v158
    %v471 = vunpack.c.l.b16 %v159
    %v472 = vunpack.c.l.b16 %v160
    %v473 = vunpack.c.l.b16 %v161
    %v474 = vunpack.c.l.b16 %v162
    %v475 = vunpack.c.l.b16 %v163
    %v476 = vunpack.c.l.b16 %v164
    %v477 = vunpack.c.l.b16 %v165
    %v478 = vunpack.c.l.b16 %v166
    %v479 = vunpack.c.l.b16 %v167
    %v480 = vunpack.c.l.b16 %v168
    %v481 = vunpack.c.l.b16 %v169
    %v482 = vunpack.c.l.b16 %v170
    %v483 = vunpack.c.l.b16 %v171
    %v484 = vunpack.c.l.b16 %v172
    %v485 = vunpack.c.l.b16 %v173
    %v486 = vunpack.c.l.b16 %v174
    %v487 = vunpack.c.l.b16 %v175
    %v488 = vunpack.c.l.b16 %v176
    %v489 = vunpack.c.l.b16 %v177
    %v490 = vunpack.c.l.b16 %v178
    %v491 = vunpack.c.l.b16 %v179
    %v492 = vunpack.c.l.b16 %v180
    %v493 = vunpack.c.l.b16 %v181
    %v494 = vunpack.c.l.b16 %v182
    %v495 = vunpack.c.l.b16 %v183
    %v496 = vunpack.c.l.b16 %v184
    %v497 = vunpack.c.l.b16 %v185
    %v498 = vunpack.c.l.b16 %v186
    %v499 = vunpack.c.l.b16 %v187
    %v500 = vunpack.c.l.b16 %v188
    %v501 = vunpack.c.l.b16 %v189
    %v502 = vunpack.c.l.b16 %v190
    %v503 = vunpack.c.l.b16 %v191
    %v504 = vunpack.c.l.b16 %v192
    %v505 = vunpack.c.l.b16 %v193
    %v506 = vunpack.c.l.b16 %v194
    %v507 = vunpack.c.l.b16 %v195
    %v508 = vunpack.c.l.b16 %v196
    %v509 = vunpack.c.l.b16 %v197
    %v510 = vunpack.c.l.b16 %v198
    %v511 = vunpack.c.l.b16 %v199
    %v512 = vunpack.c.l.b16 %v200
    %v513 = vunpack.c.l.b16 %v201
    %v514 = vunpack.c.l.b16 %v202
    %v515 = vunpack.c.l.b16 %v203
    %v516 = vunpack.c.l.b16 %v204
    %v517 = vunpack.c.l.b16 %v205
    %v518 = vunpack.c.l.b16 %v206
    %v519 = vunpack.c.l.b16 %v207
    %v520 = vunpack.c.l.b16 %v208
    %v521 = vunpack.c.l.b16 %v209
    %v522 = vunpack.c.l.b16 %v210
    %v523 = vunpack.c.l.b16 %v211
    %v524 = vunpack.c.l.b16 %v212
    %v525 = vunpack.c.l.b16 %v213
    %v526 = vunpack.c.l.b16 %v214
    %v527 = vunpack.c.l.b16 %v215
    %v528 = vunpack.c.l.b16 %v216
    %v529 = vunpack.c.l.b16 %v217
    %v530 = vunpack.c.l.b16 %v218
    %v531 = vunpack.c.l.b16 %v219
    %v532 = vunpack.c.l.b16 %v220
    %v533 = vunpack.c.l.b16 %v221
    %v534 = vunpack.c.l.b16 %v222
    %v535 = vunpack.c.l.b16 %v223
    %v536 = vunpack.c.l.b16 %v224
    %v537 = vunpack.c.l.b16 %v225
    %v538 = vunpack.c.l.b16 %v226
    %v539 = vunpack.c.l.b16 %v227
    %v540 = vunpack.c.l.b16 %v228
    %v541 = vunpack.c.l.b16 %v229
    %v542 = vunpack.c.l.b16 %v230
    %v543 = vunpack.c.l.b16 %v231
    %v544 = vunpack.c.l.b16 %v232
    %v545 = vunpack.c.l.b16 %v233
    %v546 = vunpack.c.l.b16 %v234
    %v547 = vunpack.c.l.b16 %v235
    %v548 = vpack.c.b16 %v445, %v444
    %v549 = vpack.c.b16 %v447, %v446
    %v550 = vpack.c.b16 %v449, %v448
    %v551 = vpack.c.b16 %v451, %v450
    %v552 = vpack.c.b16 %v453, %v452
    %v553 = vpack.c.b16 %v455, %v454
    %v554 = vpack.c.b16 %v457, %v456
    %v555 = vpack.c.b16 %v459, %v458
    %v556 = vpack.c.b16 %v461, %v460
    %v557 = vpack.c.b16 %v463, %v462
    %v558 = vpack.c.b16 %v465, %v464
    %v559 = vpack.c.b16 %v467, %v466
    %v560 = vpack.c.b16 %v469, %v468
    %v561 = vpack.c.b16 %v471, %v470
    %v562 = vpack.c.b16 %v473, %v472
    %v563 = vpack.c.b16 %v475, %v474
    %v564 = vpack.c.b16 %v477, %v476
    %v565 = vpack.c.b16 %v479, %v478
    %v566 = vpack.c.b16 %v481, %v480
    %v567 = vpack.c.b16 %v483, %v482
    %v568 = vpack.c.b16 %v485, %v484
    %v569 = vpack.c.b16 %v487, %v486
    %v570 = vpack.c.b16 %v489, %v488
    %v571 = vpack.c.b16 %v491, %v490
    %v572 = vpack.c.b16 %v493, %v492
    %v573 = vpack.c.b16 %v495, %v494
    %v574 = vpack.c.b16 %v497, %v496
    %v575 = vpack.c.b16 %v499, %v498
    %v576 = vpack.c.b16 %v501, %v500
    %v577 = vpack.c.b16 %v503, %v502
    %v578 = vpack.c.b16 %v505, %v504
    %v579 = vpack.c.b16 %v507, %v506
    %v580 = vpack.c.b16 %v509, %v508
    %v581 = vpack.c.b16 %v511, %v510
    %v582 = vpack.c.b16 %v513, %v512
    %v583 = vpack.c.b16 %v515, %v514
    %v584 = vpack.c.b16 %v517, %v516
    %v585 = vpack.c.b16 %v519, %v518
    %v586 = vpack.c.b16 %v521, %v520
    %v587 = vpack.c.b16 %v523, %v522
    %v588 = vpack.c.b16 %v525, %v524
    %v589 = vpack.c.b16 %v527, %v526
    %v590 = vpack.c.b16 %v529, %v528
    %v591 = vpack.c.b16 %v531, %v530
    %v592 = vpack.c.b16 %v533, %v532
    %v593 = vpack.c.b16 %v535, %v534
    %v594 = vpack.c.b16 %v537, %v536
    %v595 = vpack.c.b16 %v539, %v538
    %v596 = vpack.c.b16 %v541, %v540
    %v597 = vpack.c.b16 %v543, %v542
    %v598 = vpack.c.b16 %v545, %v544
    %v599 = vpack.c.b16 %v547, %v546
    %vm652 = vcmask 523264
    %v654 = vsel %vm652, %v131, 0
    %656 = vmatpush.bf16.msra.mxu0 %v555
    %657 = vmatpush.bf16.msra.mxu0 %v554
    %658 = vmatpush.bf16.msra.mxu0 %v553
    %659 = vmatpush.bf16.msra.mxu0 %v552
    %660 = vmatpush.bf16.msra.mxu0 %v551
    %661 = vmatpush.bf16.msra.mxu0 %v550
    %662 = vmatpush.bf16.msra.mxu0 %v549
    %663 = vmatpush.bf16.msra.mxu0 %v548
    %664 = vmatmul.bf16.gmra.mxu0 %v125
    %v665 = vpop.f32.mrf.mxu0
    %v666 = vadd.f32 0.0, %v665
    %v667 = vpop.f32.mrf.mxu0
    %668 = vdwg.mxu0
    %669 = vmatpush.bf16.msra.mxu0 %v563
    %670 = vmatpush.bf16.msra.mxu0 %v562
    %671 = vmatpush.bf16.msra.mxu0 %v561
    %672 = vmatpush.bf16.msra.mxu0 %v560
    %673 = vmatpush.bf16.msra.mxu0 %v559
    %674 = vmatpush.bf16.msra.mxu0 %v558
    %675 = vmatpush.bf16.msra.mxu0 %v557
    %676 = vmatpush.bf16.msra.mxu0 %v556
    %677 = vmatmul.bf16.gmra.mxu0 %v126
    %v678 = vpop.f32.mrf.mxu0
    %v679 = vadd.f32 %v666, %v678
    %v680 = vpop.f32.mrf.mxu0
    %681 = vdwg.mxu0
    %682 = vmatpush.bf16.msra.mxu0 %v571
    %683 = vmatpush.bf16.msra.mxu0 %v570
    %684 = vmatpush.bf16.msra.mxu0 %v569
    %685 = vmatpush.bf16.msra.mxu0 %v568
    %686 = vmatpush.bf16.msra.mxu0 %v567
    %687 = vmatpush.bf16.msra.mxu0 %v566
    %688 = vmatpush.bf16.msra.mxu0 %v565
    %689 = vmatpush.bf16.msra.mxu0 %v564
    %690 = vmatmul.bf16.gmra.mxu0 %v127
    %v691 = vpop.f32.mrf.mxu0
    %v692 = vadd.f32 %v679, %v691
    %v693 = vpop.f32.mrf.mxu0
    %694 = vdwg.mxu0
    %695 = vmatpush.bf16.msra.mxu0 %v579
    %696 = vmatpush.bf16.msra.mxu0 %v578
    %697 = vmatpush.bf16.msra.mxu0 %v577
    %698 = vmatpush.bf16.msra.mxu0 %v576
    %699 = vmatpush.bf16.msra.mxu0 %v575
    %700 = vmatpush.bf16.msra.mxu0 %v574
    %701 = vmatpush.bf16.msra.mxu0 %v573
    %702 = vmatpush.bf16.msra.mxu0 %v572
    %703 = vmatmul.bf16.gmra.mxu0 %v128
    %v704 = vpop.f32.mrf.mxu0
    %v705 = vadd.f32 %v692, %v704
    %v706 = vpop.f32.mrf.mxu0
    %707 = vdwg.mxu0
    %708 = vmatpush.bf16.msra.mxu0 %v587
    %709 = vmatpush.bf16.msra.mxu0 %v586
    %710 = vmatpush.bf16.msra.mxu0 %v585
    %711 = vmatpush.bf16.msra.mxu0 %v584
    %712 = vmatpush.bf16.msra.mxu0 %v583
    %713 = vmatpush.bf16.msra.mxu0 %v582
    %714 = vmatpush.bf16.msra.mxu0 %v581
    %715 = vmatpush.bf16.msra.mxu0 %v580
    %716 = vmatmul.bf16.gmra.mxu0 %v129
    %v717 = vpop.f32.mrf.mxu0
    %v718 = vadd.f32 %v705, %v717
    %v719 = vpop.f32.mrf.mxu0
    %720 = vdwg.mxu0
    %721 = vmatpush.bf16.msra.mxu0 %v595
    %722 = vmatpush.bf16.msra.mxu0 %v594
    %723 = vmatpush.bf16.msra.mxu0 %v593
    %724 = vmatpush.bf16.msra.mxu0 %v592
    %725 = vmatpush.bf16.msra.mxu0 %v591
    %726 = vmatpush.bf16.msra.mxu0 %v590
    %727 = vmatpush.bf16.msra.mxu0 %v589
    %728 = vmatpush.bf16.msra.mxu0 %v588
    %729 = vmatmul.bf16.gmra.mxu0 %v130
    %v730 = vpop.f32.mrf.mxu0
    %v731 = vadd.f32 %v718, %v730
    %v732 = vpop.f32.mrf.mxu0
    %733 = vdwg.mxu0
    %734 = vmatpush.bf16.msra.mxu0 0
    %735 = vmatpush.bf16.msra.mxu0 0
    %736 = vmatpush.bf16.msra.mxu0 0
    %737 = vmatpush.bf16.msra.mxu0 0
    %738 = vmatpush.bf16.msra.mxu0 %v599
    %739 = vmatpush.bf16.msra.mxu0 %v598
    %740 = vmatpush.bf16.msra.mxu0 %v597
    %741 = vmatpush.bf16.msra.mxu0 %v596
    %742 = vmatmul.bf16.gmra.mxu0 %v654
    %v743 = vpop.f32.mrf.mxu0
    %v744 = vadd.f32 %v731, %v743
    %v745 = vpop.f32.mrf.mxu0
    %746 = vdwg.mxu0
    %v751 = vunpack.c.l.b16 %v71
    %v752 = vunpack.c.h.b16 %v71
    %v753 = vunpack.c.l.b16 %v72
    %v754 = vunpack.c.h.b16 %v72
    %v755 = vunpack.c.l.b16 %v73
    %v756 = vunpack.c.h.b16 %v73
    %v757 = vunpack.c.l.b16 %v74
    %v758 = vpack.c.b16 %v751, %v751
    %v759 = vpack.c.b16 %v752, %v752
    %v760 = vpack.c.b16 %v753, %v753
    %v761 = vpack.c.b16 %v754, %v754
    %v762 = vpack.c.b16 %v755, %v755
    %v763 = vpack.c.b16 %v756, %v756
    %v764 = vpack.c.b16 %v757, %v757
    %v772 = vsel %vm652, %v764, 0
    %774 = vmatpush.bf16.msra.mxu0 %v555
    %775 = vmatpush.bf16.msra.mxu0 %v554
    %776 = vmatpush.bf16.msra.mxu0 %v553
    %777 = vmatpush.bf16.msra.mxu0 %v552
    %778 = vmatpush.bf16.msra.mxu0 %v551
    %779 = vmatpush.bf16.msra.mxu0 %v550
    %780 = vmatpush.bf16.msra.mxu0 %v549
    %781 = vmatpush.bf16.msra.mxu0 %v548
    %782 = vmatmul.bf16.gmra.mxu0 %v758
    %v783 = vpop.f32.mrf.mxu0
    %v784 = vadd.f32 %v744, %v783
    %v785 = vpop.f32.mrf.mxu0
    %786 = vdwg.mxu0
    %787 = vmatpush.bf16.msra.mxu0 %v563
    %788 = vmatpush.bf16.msra.mxu0 %v562
    %789 = vmatpush.bf16.msra.mxu0 %v561
    %790 = vmatpush.bf16.msra.mxu0 %v560
    %791 = vmatpush.bf16.msra.mxu0 %v559
    %792 = vmatpush.bf16.msra.mxu0 %v558
    %793 = vmatpush.bf16.msra.mxu0 %v557
    %794 = vmatpush.bf16.msra.mxu0 %v556
    %795 = vmatmul.bf16.gmra.mxu0 %v759
    %v796 = vpop.f32.mrf.mxu0
    %v797 = vadd.f32 %v784, %v796
    %v798 = vpop.f32.mrf.mxu0
    %799 = vdwg.mxu0
    %800 = vmatpush.bf16.msra.mxu0 %v571
    %801 = vmatpush.bf16.msra.mxu0 %v570
    %802 = vmatpush.bf16.msra.mxu0 %v569
    %803 = vmatpush.bf16.msra.mxu0 %v568
    %804 = vmatpush.bf16.msra.mxu0 %v567
    %805 = vmatpush.bf16.msra.mxu0 %v566
    %806 = vmatpush.bf16.msra.mxu0 %v565
    %807 = vmatpush.bf16.msra.mxu0 %v564
    %808 = vmatmul.bf16.gmra.mxu0 %v760
    %v809 = vpop.f32.mrf.mxu0
    %v810 = vadd.f32 %v797, %v809
    %v811 = vpop.f32.mrf.mxu0
    %812 = vdwg.mxu0
    %813 = vmatpush.bf16.msra.mxu0 %v579
    %814 = vmatpush.bf16.msra.mxu0 %v578
    %815 = vmatpush.bf16.msra.mxu0 %v577
    %816 = vmatpush.bf16.msra.mxu0 %v576
    %817 = vmatpush.bf16.msra.mxu0 %v575
    %818 = vmatpush.bf16.msra.mxu0 %v574
    %819 = vmatpush.bf16.msra.mxu0 %v573
    %820 = vmatpush.bf16.msra.mxu0 %v572
    %821 = vmatmul.bf16.gmra.mxu0 %v761
    %v822 = vpop.f32.mrf.mxu0
    %v823 = vadd.f32 %v810, %v822
    %v824 = vpop.f32.mrf.mxu0
    %825 = vdwg.mxu0
    %826 = vmatpush.bf16.msra.mxu0 %v587
    %827 = vmatpush.bf16.msra.mxu0 %v586
    %828 = vmatpush.bf16.msra.mxu0 %v585
    %829 = vmatpush.bf16.msra.mxu0 %v584
    %830 = vmatpush.bf16.msra.mxu0 %v583
    %831 = vmatpush.bf16.msra.mxu0 %v582
    %832 = vmatpush.bf16.msra.mxu0 %v581
    %833 = vmatpush.bf16.msra.mxu0 %v580
    %834 = vmatmul.bf16.gmra.mxu0 %v762
    %v835 = vpop.f32.mrf.mxu0
    %v836 = vadd.f32 %v823, %v835
    %v837 = vpop.f32.mrf.mxu0
    %838 = vdwg.mxu0
    %839 = vmatpush.bf16.msra.mxu0 %v595
    %840 = vmatpush.bf16.msra.mxu0 %v594
    %841 = vmatpush.bf16.msra.mxu0 %v593
    %842 = vmatpush.bf16.msra.mxu0 %v592
    %843 = vmatpush.bf16.msra.mxu0 %v591
    %844 = vmatpush.bf16.msra.mxu0 %v590
    %845 = vmatpush.bf16.msra.mxu0 %v589
    %846 = vmatpush.bf16.msra.mxu0 %v588
    %847 = vmatmul.bf16.gmra.mxu0 %v763
    %v848 = vpop.f32.mrf.mxu0
    %v849 = vadd.f32 %v836, %v848
    %v850 = vpop.f32.mrf.mxu0
    %851 = vdwg.mxu0
    %852 = vmatpush.bf16.msra.mxu0 0
    %853 = vmatpush.bf16.msra.mxu0 0
    %854 = vmatpush.bf16.msra.mxu0 0
    %855 = vmatpush.bf16.msra.mxu0 0
    %856 = vmatpush.bf16.msra.mxu0 %v599
    %857 = vmatpush.bf16.msra.mxu0 %v598
    %858 = vmatpush.bf16.msra.mxu0 %v597
    %859 = vmatpush.bf16.msra.mxu0 %v596
    %860 = vmatmul.bf16.gmra.mxu0 %v772
    %v861 = vpop.f32.mrf.mxu0
    %v862 = vadd.f32 %v849, %v861
    %v863 = vpop.f32.mrf.mxu0
    %864 = vdwg.mxu0
    %v969 = vunpack.c.l.b16 %v236
    %v970 = vunpack.c.l.b16 %v237
    %v971 = vunpack.c.l.b16 %v238
    %v972 = vunpack.c.l.b16 %v239
    %v973 = vunpack.c.l.b16 %v240
    %v974 = vunpack.c.l.b16 %v241
    %v975 = vunpack.c.l.b16 %v242
    %v976 = vunpack.c.l.b16 %v243
    %v977 = vunpack.c.l.b16 %v244
    %v978 = vunpack.c.l.b16 %v245
    %v979 = vunpack.c.l.b16 %v246
    %v980 = vunpack.c.l.b16 %v247
    %v981 = vunpack.c.l.b16 %v248
    %v982 = vunpack.c.l.b16 %v249
    %v983 = vunpack.c.l.b16 %v250
    %v984 = vunpack.c.l.b16 %v251
    %v985 = vunpack.c.l.b16 %v252
    %v986 = vunpack.c.l.b16 %v253
    %v987 = vunpack.c.l.b16 %v254
    %v988 = vunpack.c.l.b16 %v255
    %v989 = vunpack.c.l.b16 %v256
    %v990 = vunpack.c.l.b16 %v257
    %v991 = vunpack.c.l.b16 %v258
    %v992 = vunpack.c.l.b16 %v259
    %v993 = vunpack.c.l.b16 %v260
    %v994 = vunpack.c.l.b16 %v261
    %v995 = vunpack.c.l.b16 %v262
    %v996 = vunpack.c.l.b16 %v263
    %v997 = vunpack.c.l.b16 %v264
    %v998 = vunpack.c.l.b16 %v265
    %v999 = vunpack.c.l.b16 %v266
    %v1000 = vunpack.c.l.b16 %v267
    %v1001 = vunpack.c.l.b16 %v268
    %v1002 = vunpack.c.l.b16 %v269
    %v1003 = vunpack.c.l.b16 %v270
    %v1004 = vunpack.c.l.b16 %v271
    %v1005 = vunpack.c.l.b16 %v272
    %v1006 = vunpack.c.l.b16 %v273
    %v1007 = vunpack.c.l.b16 %v274
    %v1008 = vunpack.c.l.b16 %v275
    %v1009 = vunpack.c.l.b16 %v276
    %v1010 = vunpack.c.l.b16 %v277
    %v1011 = vunpack.c.l.b16 %v278
    %v1012 = vunpack.c.l.b16 %v279
    %v1013 = vunpack.c.l.b16 %v280
    %v1014 = vunpack.c.l.b16 %v281
    %v1015 = vunpack.c.l.b16 %v282
    %v1016 = vunpack.c.l.b16 %v283
    %v1017 = vunpack.c.l.b16 %v284
    %v1018 = vunpack.c.l.b16 %v285
    %v1019 = vunpack.c.l.b16 %v286
    %v1020 = vunpack.c.l.b16 %v287
    %v1021 = vunpack.c.l.b16 %v288
    %v1022 = vunpack.c.l.b16 %v289
    %v1023 = vunpack.c.l.b16 %v290
    %v1024 = vunpack.c.l.b16 %v291
    %v1025 = vunpack.c.l.b16 %v292
    %v1026 = vunpack.c.l.b16 %v293
    %v1027 = vunpack.c.l.b16 %v294
    %v1028 = vunpack.c.l.b16 %v295
    %v1029 = vunpack.c.l.b16 %v296
    %v1030 = vunpack.c.l.b16 %v297
    %v1031 = vunpack.c.l.b16 %v298
    %v1032 = vunpack.c.l.b16 %v299
    %v1033 = vunpack.c.l.b16 %v300
    %v1034 = vunpack.c.l.b16 %v301
    %v1035 = vunpack.c.l.b16 %v302
    %v1036 = vunpack.c.l.b16 %v303
    %v1037 = vunpack.c.l.b16 %v304
    %v1038 = vunpack.c.l.b16 %v305
    %v1039 = vunpack.c.l.b16 %v306
    %v1040 = vunpack.c.l.b16 %v307
    %v1041 = vunpack.c.l.b16 %v308
    %v1042 = vunpack.c.l.b16 %v309
    %v1043 = vunpack.c.l.b16 %v310
    %v1044 = vunpack.c.l.b16 %v311
    %v1045 = vunpack.c.l.b16 %v312
    %v1046 = vunpack.c.l.b16 %v313
    %v1047 = vunpack.c.l.b16 %v314
    %v1048 = vunpack.c.l.b16 %v315
    %v1049 = vunpack.c.l.b16 %v316
    %v1050 = vunpack.c.l.b16 %v317
    %v1051 = vunpack.c.l.b16 %v318
    %v1052 = vunpack.c.l.b16 %v319
    %v1053 = vunpack.c.l.b16 %v320
    %v1054 = vunpack.c.l.b16 %v321
    %v1055 = vunpack.c.l.b16 %v322
    %v1056 = vunpack.c.l.b16 %v323
    %v1057 = vunpack.c.l.b16 %v324
    %v1058 = vunpack.c.l.b16 %v325
    %v1059 = vunpack.c.l.b16 %v326
    %v1060 = vunpack.c.l.b16 %v327
    %v1061 = vunpack.c.l.b16 %v328
    %v1062 = vunpack.c.l.b16 %v329
    %v1063 = vunpack.c.l.b16 %v330
    %v1064 = vunpack.c.l.b16 %v331
    %v1065 = vunpack.c.l.b16 %v332
    %v1066 = vunpack.c.l.b16 %v333
    %v1067 = vunpack.c.l.b16 %v334
    %v1068 = vunpack.c.l.b16 %v335
    %v1069 = vunpack.c.l.b16 %v336
    %v1070 = vunpack.c.l.b16 %v337
    %v1071 = vunpack.c.l.b16 %v338
    %v1072 = vunpack.c.l.b16 %v339
    %v1073 = vpack.c.b16 %v970, %v969
    %v1074 = vpack.c.b16 %v972, %v971
    %v1075 = vpack.c.b16 %v974, %v973
    %v1076 = vpack.c.b16 %v976, %v975
    %v1077 = vpack.c.b16 %v978, %v977
    %v1078 = vpack.c.b16 %v980, %v979
    %v1079 = vpack.c.b16 %v982, %v981
    %v1080 = vpack.c.b16 %v984, %v983
    %v1081 = vpack.c.b16 %v986, %v985
    %v1082 = vpack.c.b16 %v988, %v987
    %v1083 = vpack.c.b16 %v990, %v989
    %v1084 = vpack.c.b16 %v992, %v991
    %v1085 = vpack.c.b16 %v994, %v993
    %v1086 = vpack.c.b16 %v996, %v995
    %v1087 = vpack.c.b16 %v998, %v997
    %v1088 = vpack.c.b16 %v1000, %v999
    %v1089 = vpack.c.b16 %v1002, %v1001
    %v1090 = vpack.c.b16 %v1004, %v1003
    %v1091 = vpack.c.b16 %v1006, %v1005
    %v1092 = vpack.c.b16 %v1008, %v1007
    %v1093 = vpack.c.b16 %v1010, %v1009
    %v1094 = vpack.c.b16 %v1012, %v1011
    %v1095 = vpack.c.b16 %v1014, %v1013
    %v1096 = vpack.c.b16 %v1016, %v1015
    %v1097 = vpack.c.b16 %v1018, %v1017
    %v1098 = vpack.c.b16 %v1020, %v1019
    %v1099 = vpack.c.b16 %v1022, %v1021
    %v1100 = vpack.c.b16 %v1024, %v1023
    %v1101 = vpack.c.b16 %v1026, %v1025
    %v1102 = vpack.c.b16 %v1028, %v1027
    %v1103 = vpack.c.b16 %v1030, %v1029
    %v1104 = vpack.c.b16 %v1032, %v1031
    %v1105 = vpack.c.b16 %v1034, %v1033
    %v1106 = vpack.c.b16 %v1036, %v1035
    %v1107 = vpack.c.b16 %v1038, %v1037
    %v1108 = vpack.c.b16 %v1040, %v1039
    %v1109 = vpack.c.b16 %v1042, %v1041
    %v1110 = vpack.c.b16 %v1044, %v1043
    %v1111 = vpack.c.b16 %v1046, %v1045
    %v1112 = vpack.c.b16 %v1048, %v1047
    %v1113 = vpack.c.b16 %v1050, %v1049
    %v1114 = vpack.c.b16 %v1052, %v1051
    %v1115 = vpack.c.b16 %v1054, %v1053
    %v1116 = vpack.c.b16 %v1056, %v1055
    %v1117 = vpack.c.b16 %v1058, %v1057
    %v1118 = vpack.c.b16 %v1060, %v1059
    %v1119 = vpack.c.b16 %v1062, %v1061
    %v1120 = vpack.c.b16 %v1064, %v1063
    %v1121 = vpack.c.b16 %v1066, %v1065
    %v1122 = vpack.c.b16 %v1068, %v1067
    %v1123 = vpack.c.b16 %v1070, %v1069
    %v1124 = vpack.c.b16 %v1072, %v1071
    %1177 = vmatpush.bf16.msra.mxu0 %v1080
    %1178 = vmatpush.bf16.msra.mxu0 %v1079
    %1179 = vmatpush.bf16.msra.mxu0 %v1078
    %1180 = vmatpush.bf16.msra.mxu0 %v1077
    %1181 = vmatpush.bf16.msra.mxu0 %v1076
    %1182 = vmatpush.bf16.msra.mxu0 %v1075
    %1183 = vmatpush.bf16.msra.mxu0 %v1074
    %1184 = vmatpush.bf16.msra.mxu0 %v1073
    %1185 = vmatmul.bf16.gmra.mxu0 %v758
    %v1186 = vpop.f32.mrf.mxu0
    %v1187 = vadd.f32 0.0, %v1186
    %v1188 = vpop.f32.mrf.mxu0
    %1189 = vdwg.mxu0
    %1190 = vmatpush.bf16.msra.mxu0 %v1088
    %1191 = vmatpush.bf16.msra.mxu0 %v1087
    %1192 = vmatpush.bf16.msra.mxu0 %v1086
    %1193 = vmatpush.bf16.msra.mxu0 %v1085
    %1194 = vmatpush.bf16.msra.mxu0 %v1084
    %1195 = vmatpush.bf16.msra.mxu0 %v1083
    %1196 = vmatpush.bf16.msra.mxu0 %v1082
    %1197 = vmatpush.bf16.msra.mxu0 %v1081
    %1198 = vmatmul.bf16.gmra.mxu0 %v759
    %v1199 = vpop.f32.mrf.mxu0
    %v1200 = vadd.f32 %v1187, %v1199
    %v1201 = vpop.f32.mrf.mxu0
    %1202 = vdwg.mxu0
    %1203 = vmatpush.bf16.msra.mxu0 %v1096
    %1204 = vmatpush.bf16.msra.mxu0 %v1095
    %1205 = vmatpush.bf16.msra.mxu0 %v1094
    %1206 = vmatpush.bf16.msra.mxu0 %v1093
    %1207 = vmatpush.bf16.msra.mxu0 %v1092
    %1208 = vmatpush.bf16.msra.mxu0 %v1091
    %1209 = vmatpush.bf16.msra.mxu0 %v1090
    %1210 = vmatpush.bf16.msra.mxu0 %v1089
    %1211 = vmatmul.bf16.gmra.mxu0 %v760
    %v1212 = vpop.f32.mrf.mxu0
    %v1213 = vadd.f32 %v1200, %v1212
    %v1214 = vpop.f32.mrf.mxu0
    %1215 = vdwg.mxu0
    %1216 = vmatpush.bf16.msra.mxu0 %v1104
    %1217 = vmatpush.bf16.msra.mxu0 %v1103
    %1218 = vmatpush.bf16.msra.mxu0 %v1102
    %1219 = vmatpush.bf16.msra.mxu0 %v1101
    %1220 = vmatpush.bf16.msra.mxu0 %v1100
    %1221 = vmatpush.bf16.msra.mxu0 %v1099
    %1222 = vmatpush.bf16.msra.mxu0 %v1098
    %1223 = vmatpush.bf16.msra.mxu0 %v1097
    %1224 = vmatmul.bf16.gmra.mxu0 %v761
    %v1225 = vpop.f32.mrf.mxu0
    %v1226 = vadd.f32 %v1213, %v1225
    %v1227 = vpop.f32.mrf.mxu0
    %1228 = vdwg.mxu0
    %1229 = vmatpush.bf16.msra.mxu0 %v1112
    %1230 = vmatpush.bf16.msra.mxu0 %v1111
    %1231 = vmatpush.bf16.msra.mxu0 %v1110
    %1232 = vmatpush.bf16.msra.mxu0 %v1109
    %1233 = vmatpush.bf16.msra.mxu0 %v1108
    %1234 = vmatpush.bf16.msra.mxu0 %v1107
    %1235 = vmatpush.bf16.msra.mxu0 %v1106
    %1236 = vmatpush.bf16.msra.mxu0 %v1105
    %1237 = vmatmul.bf16.gmra.mxu0 %v762
    %v1238 = vpop.f32.mrf.mxu0
    %v1239 = vadd.f32 %v1226, %v1238
    %v1240 = vpop.f32.mrf.mxu0
    %1241 = vdwg.mxu0
    %1242 = vmatpush.bf16.msra.mxu0 %v1120
    %1243 = vmatpush.bf16.msra.mxu0 %v1119
    %1244 = vmatpush.bf16.msra.mxu0 %v1118
    %1245 = vmatpush.bf16.msra.mxu0 %v1117
    %1246 = vmatpush.bf16.msra.mxu0 %v1116
    %1247 = vmatpush.bf16.msra.mxu0 %v1115
    %1248 = vmatpush.bf16.msra.mxu0 %v1114
    %1249 = vmatpush.bf16.msra.mxu0 %v1113
    %1250 = vmatmul.bf16.gmra.mxu0 %v763
    %v1251 = vpop.f32.mrf.mxu0
    %v1252 = vadd.f32 %v1239, %v1251
    %v1253 = vpop.f32.mrf.mxu0
    %1254 = vdwg.mxu0
    %1255 = vmatpush.bf16.msra.mxu0 0
    %1256 = vmatpush.bf16.msra.mxu0 0
    %1257 = vmatpush.bf16.msra.mxu0 0
    %1258 = vmatpush.bf16.msra.mxu0 0
    %1259 = vmatpush.bf16.msra.mxu0 %v1124
    %1260 = vmatpush.bf16.msra.mxu0 %v1123
    %1261 = vmatpush.bf16.msra.mxu0 %v1122
    %1262 = vmatpush.bf16.msra.mxu0 %v1121
    %1263 = vmatmul.bf16.gmra.mxu0 %v772
    %v1264 = vpop.f32.mrf.mxu0
    %v1265 = vadd.f32 %v1252, %v1264
    %v1266 = vpop.f32.mrf.mxu0
    %1267 = vdwg.mxu0
    %v1268 = vadd.f32 %v862, %v1265
    %v1269 = vld [vmem:[%s3] sm:$0x1]
    %v1271 = vperm.slane %v1269, 0
    %v1273 = vadd.f32 %v1268, %v1271
    %1274 = vst [vmem:[%s4] sm:$0x3] %v1273
    // Predicated region
    $region26: #{linear_forward.1} parent=1 // pred_check
      _
    $region27: #{linear_forward.1} parent=1 // pred_check_branch
      %1276 = sbr.rel (0) target = $region29
    $region28: #{linear_forward.1} parent=1 // pred_region
      _
    $region29: #{linear_forward.1} parent=1 // pred_fallthru
      _
    // Predicated region
    $region30: #{linear_forward.1} parent=1 // pred_check
      _
    $region31: #{linear_forward.1} parent=1 // pred_check_branch
      %1278 = sbr.rel (0) target = $region33
    $region32: #{linear_forward.1} parent=1 // pred_region
      _
    $region33: #{linear_forward.1} parent=1 // pred_fallthru
      _
    %1279 = vsyncpa [#allocation3], 1
    %1280 = vsyncpa [#allocation5], 1

</llo_original>
